<compile_context>
chip_gen: v7x
topology: tpu7x:2x2x1
jax: 0.10.0
libtpu: 0.0.40
codegen_flags: <defaults>
</compile_context>

<pallas_src>
import functools

import jax
import jax.numpy as jnp
from jax import lax
from jax.experimental import pallas as pl
from jax.experimental.pallas import tpu as pltpu


# ----------------------------- helpers ---------------------------------------

def _round_up(a, b):
    return -(-a // b) * b


def _buf_bytes(rows, cols, itemsize):
    """VMEM bytes of one buffer, rounded to native (sublane, 128) tiles."""
    sub = 32 // itemsize                       # 8 for f32, 16 for bf16
    return _round_up(rows, sub) * _round_up(cols, 128) * itemsize


def _pass2_footprint(tmg, kp, np_, in_b, out_b):
    """Double-buffered VMEM footprint of pass 2 (the larger of the two passes)."""
    return 2 * (_buf_bytes(tmg, kp, in_b) + _buf_bytes(tmg, np_, out_b)
                + _buf_bytes(kp, np_, in_b) + 2 * _buf_bytes(1, np_, 4))


# ----------------------------- kernels ---------------------------------------

def _stats_kernel(x_ref, gram_ref, colsum_ref):
    """Accumulate Gram matrix and per-column sum of x across the grid."""
    @pl.when(pl.program_id(0) == 0)
    def _():
        gram_ref[...] = jnp.zeros_like(gram_ref)
        colsum_ref[...] = jnp.zeros_like(colsum_ref)

    x = x_ref[...]
    # G += x^T @ x  (contract over the long row dimension; f32 accumulation).
    gram_ref[...] += lax.dot_general(
        x, x, dimension_numbers=(((0,), (0,)), ((), ())),
        preferred_element_type=jnp.float32)
    colsum_ref[...] += jnp.sum(x.astype(jnp.float32), axis=0, keepdims=True)


def _apply_kernel(x_ref, w_ref, scale_ref, bias_ref, o_ref, *, need_relu):
    """Recompute (x @ w) for this row tile and apply the fused BN affine + ReLU."""
    y = jnp.dot(x_ref[...], w_ref[...], preferred_element_type=jnp.float32)
    y = y * scale_ref[...] + bias_ref[...]
    if need_relu:
        y = jnp.maximum(y, 0.0)
    o_ref[...] = y.astype(o_ref.dtype)


# ----------------------------- wrapper ----------------------------------------

def basic_deconv2d(x_nchw, weight, gamma, beta, *, stride, need_relu=True,
                   eps=1e-5, block_rows=1024, compute_dtype=jnp.bfloat16,
                   out_dtype=None, vmem_budget_bytes=24 << 20):
    """ConvTranspose2d(Cin, Cout, kernel_size=stride, stride=stride, padding=0,
    bias=False) + BatchNorm2d (training-mode batch stats, biased var) + ReLU."""
    if out_dtype is None:
        out_dtype = compute_dtype

    N, Cin, H, W = x_nchw.shape
    Cin_w, Cout, kH, kW = weight.shape
    assert Cin == Cin_w and kH == stride and kW == stride, \
        "only kernel_size == stride, padding=0 (disjoint scatter) is supported"
    Hout, Wout = H * stride, W * stride
    Ncols = Cout * kH * kW
    M = N * H * W

    # Lane-density packing factor: pack g consecutive rows so the stored minor
    # dim g*Ncols is >= 128 (no zero-padding of write bytes, no in-kernel reshape).
    g = 1 if Ncols >= 128 else -(-128 // Ncols)
    Kp, Np = g * Cin, g * Ncols

    in_b = jnp.dtype(compute_dtype).itemsize
    out_b = jnp.dtype(out_dtype).itemsize

    # NCHW -> NHWC -> (M, Cin); weight (Cin,Cout,kH,kW) -> (Cin, kH*kW*Cout)
    # with columns ordered (kh, kw, co).
    x2d = jnp.transpose(x_nchw, (0, 2, 3, 1)).reshape(M, Cin).astype(compute_dtype)
    w2d = jnp.transpose(weight, (0, 2, 3, 1)).reshape(Cin, Ncols).astype(compute_dtype)
    w2d_f32 = w2d.astype(jnp.float32)          # bf16-rounded weights, f32 math
    if g > 1:
        w_pk = jnp.kron(jnp.eye(g, dtype=jnp.float32), w2d_f32).astype(compute_dtype)
    else:
        w_pk = w2d

    # Tile rows (of the packed matrix): multiple of 8, shrunk to the VMEM budget.
    Mg = -(-M // g)
    tmg = max(8, min(_round_up(block_rows, 8), _round_up(Mg, 8)))
    while _pass2_footprint(tmg, Kp, Np, in_b, out_b) > vmem_budget_bytes and tmg > 64:
        tmg = max(64, _round_up(tmg // 2, 8))
    n_tiles = -(-Mg // tmg)
    Mg_pad = n_tiles * tmg

    # Pad rows with zeros (zero rows contribute nothing to the statistics,
    # which are divided by the true element count) and pack g rows per row.
    rows_pad = Mg_pad * g
    if rows_pad != M:
        x2d = jnp.pad(x2d, ((0, rows_pad - M), (0, 0)))
    x_pk = x2d.reshape(Mg_pad, Kp)

    footprint = _pass2_footprint(tmg, Kp, Np, in_b, out_b)
    vmem_limit = int(min(max(footprint + (4 << 20), 8 << 20), 64 << 20))

    x_spec = pl.BlockSpec((tmg, Kp), lambda i: (i, 0))

    # ---- pass 1: Gram matrix + column sums of x (pure x read) ----------------
    gram, colsum = pl.pallas_call(
        _stats_kernel,
        out_shape=(jax.ShapeDtypeStruct((Kp, Kp), jnp.float32),
                   jax.ShapeDtypeStruct((1, Kp), jnp.float32)),
        grid=(n_tiles,),
        in_specs=[x_spec],
        out_specs=(pl.BlockSpec((Kp, Kp), lambda i: (0, 0)),
                   pl.BlockSpec((1, Kp), lambda i: (0, 0))),
        compiler_params=pltpu.CompilerParams(
            dimension_semantics=("arbitrary",),        # resident accumulators
            vmem_limit_bytes=vmem_limit),
    )(x_pk)

    # ---- tiny JAX finalize: fold batch stats + gamma/beta into scale/bias ----
    if g > 1:
        g4 = gram.reshape(g, Cin, g, Cin)
        gram_c = sum(g4[b, :, b, :] for b in range(g))           # (Cin, Cin)
        colsum_c = colsum.reshape(g, Cin).sum(axis=0)             # (Cin,)
    else:
        gram_c, colsum_c = gram, colsum[0]
    ch_sum = colsum_c @ w2d_f32                                   # (Ncols,)
    ch_sumsq = jnp.sum(w2d_f32 * (gram_c @ w2d_f32), axis=0)      # diag(W^T G W)
    P = float(N * Hout * Wout)                 # true per-channel element count
    sum_c = ch_sum.reshape(kH * kW, Cout).sum(axis=0)
    sumsq_c = ch_sumsq.reshape(kH * kW, Cout).sum(axis=0)
    mean = sum_c / P
    # NOTE: E[x^2]-E[x]^2 is cancellation-prone when |mean| >> std at huge M.
    var = jnp.maximum(sumsq_c / P - mean * mean, 0.0)             # biased variance
    scale_c = gamma.astype(jnp.float32) * lax.rsqrt(var + eps)
    bias_c = beta.astype(jnp.float32) - mean * scale_c
    # Column order is (block b, kh, kw, co): scale depends only on co.
    scale_pk = jnp.tile(scale_c, kH * kW * g).reshape(1, Np).astype(jnp.float32)
    bias_pk = jnp.tile(bias_c, kH * kW * g).reshape(1, Np).astype(jnp.float32)

    # ---- pass 2: recompute matmul, fused BN + ReLU, lane-dense bf16 store ----
    out_pk = pl.pallas_call(
        functools.partial(_apply_kernel, need_relu=need_relu),
        out_shape=jax.ShapeDtypeStruct((Mg_pad, Np), out_dtype),
        grid=(n_tiles,),
        in_specs=[x_spec,
                  pl.BlockSpec((Kp, Np), lambda i: (0, 0)),
                  pl.BlockSpec((1, Np), lambda i: (0, 0)),
                  pl.BlockSpec((1, Np), lambda i: (0, 0))],
        out_specs=pl.BlockSpec((tmg, Np), lambda i: (i, 0)),
        compiler_params=pltpu.CompilerParams(
            dimension_semantics=("parallel",),
            vmem_limit_bytes=vmem_limit),
    )(x_pk, w_pk, scale_pk, bias_pk)

    # Free un-pack (same linear order), then one XLA interleave back to NCHW.
    out2d = out_pk.reshape(Mg_pad * g, Ncols)[:M]
    out = out2d.reshape(N, H, W, kH, kW, Cout)
    out = jnp.transpose(out, (0, 5, 1, 3, 2, 4)).reshape(N, Cout, Hout, Wout)
    return out


# ----------------------------- reference ---------------------------------------

def _reference(x, weight, gamma, beta, *, stride, eps=1e-5, need_relu=True,
               compute_dtype=jnp.bfloat16):
    """Pure-JAX reference: explicit transposed-conv scatter + batch-stat BN + ReLU.
    Inputs are rounded to the same compute dtype the kernel feeds the MXU."""
    x = x.astype(compute_dtype).astype(jnp.float32)
    weight = weight.astype(compute_dtype).astype(jnp.float32)
    N, Cin, H, W = x.shape
    _, Cout, kH, kW = weight.shape
    Hout, Wout = H * stride, W * stride
    y = jnp.zeros((N, Cout, Hout, Wout), jnp.float32)
    for kh in range(kH):
        for kw in range(kW):
            contrib = jnp.einsum("nchw,cd->ndhw", x, weight[:, :, kh, kw])
            y = y.at[:, :, kh::stride, kw::stride].set(contrib)
    mean = y.mean(axis=(0, 2, 3), keepdims=True)
    var = y.var(axis=(0, 2, 3), keepdims=True)          # biased variance
    out = (y - mean) * lax.rsqrt(var + eps) * gamma.reshape(1, -1, 1, 1) \
          + beta.reshape(1, -1, 1, 1)
    if need_relu:
        out = jnp.maximum(out, 0.0)
    return out


# ----------------------------- self-test ----------------------------------------

if __name__ == "__main__":
    key = jax.random.PRNGKey(0)
    kx, kw_, kg, kb = jax.random.split(key, 4)

    # Config 1: BasicDeConv2d(4, 8, kernel_size=2, stride=2), bf16 output.
    # Ncols = 32 -> g = 4 packed rows -> lane width 128; Mg = 128 -> 4 row tiles.
    N, Cin, H, W = 2, 4, 16, 16
    Cout, k = 8, 2
    x = jax.random.normal(kx, (N, Cin, H, W), jnp.float32)
    weight = 0.1 * jax.random.normal(kw_, (Cin, Cout, k, k), jnp.float32)
    gamma = 1.0 + 0.1 * jax.random.normal(kg, (Cout,), jnp.float32)
    beta = 0.1 * jax.random.normal(kb, (Cout,), jnp.float32)

    out = basic_deconv2d(x, weight, gamma, beta, stride=k, need_relu=True,
                         block_rows=32)
    out = jax.block_until_ready(out)
    ref = _reference(x, weight, gamma, beta, stride=k, need_relu=True)
    assert out.shape == (N, Cout, H * k, W * k), out.shape
    out_f32 = out.astype(jnp.float32)
    err = float(jnp.max(jnp.abs(out_f32 - ref)))
    assert jnp.allclose(out_f32, ref, atol=5e-2, rtol=5e-2), err

    # Config 2: odd shapes (row-padding path), no ReLU, f32 output.
    # Ncols = 54 -> g = 3 -> lane width 162; Mg = 12 -> 2 tiles with zero rows.
    N2, Cin2, H2, W2 = 1, 4, 5, 7
    Cout2, k2 = 6, 3
    kx2, kw2, kg2, kb2 = jax.random.split(jax.random.PRNGKey(1), 4)
    x2 = jax.random.normal(kx2, (N2, Cin2, H2, W2), jnp.float32)
    w2 = 0.2 * jax.random.normal(kw2, (Cin2, Cout2, k2, k2), jnp.float32)
    g2 = 1.0 + 0.1 * jax.random.normal(kg2, (Cout2,), jnp.float32)
    b2 = 0.1 * jax.random.normal(kb2, (Cout2,), jnp.float32)
    out2 = basic_deconv2d(x2, w2, g2, b2, stride=k2, need_relu=False,
                          block_rows=8, out_dtype=jnp.float32)
    out2 = jax.block_until_ready(out2)
    ref2 = _reference(x2, w2, g2, b2, stride=k2, need_relu=False)
    assert out2.shape == (N2, Cout2, H2 * k2, W2 * k2), out2.shape
    err2 = float(jnp.max(jnp.abs(out2 - ref2)))
    assert jnp.allclose(out2, ref2, atol=5e-3, rtol=5e-3), err2

    print("KERNEL_OK")
</pallas_src>

<mosaic_0001>
module attributes {stable_mosaic.version = 11 : i64} {
  func.func @_stats_kernel(%arg0: i32, %arg1: memref<32x16xbf16, #tpu.memory_space<vmem>>, %arg2: memref<16x16xf32, #tpu.memory_space<vmem>>, %arg3: memref<1x16xf32, #tpu.memory_space<vmem>>) attributes {dimension_semantics = [#tpu.dimension_semantics<arbitrary>], iteration_bounds = array<i64: 4>, scalar_prefetch = 0 : i64, scratch_operands = 0 : i64, tpu.core_type = #tpu.core_type<tc>, window_params = [{transform_indices = @transform_0, window_bounds = array<i64: 32, 16>}, {pipeline_mode = #tpu.pipeline_mode<synchronous>, transform_indices = @transform_1, window_bounds = array<i64: 16, 16>}, {pipeline_mode = #tpu.pipeline_mode<synchronous>, transform_indices = @transform_2, window_bounds = array<i64: 1, 16>}]} {
    %c0_i32 = arith.constant 0 : i32
    %0 = arith.cmpi eq, %arg0, %c0_i32 : i32
    %1 = arith.extui %0 : i1 to i32
    %c0_i32_0 = arith.constant 0 : i32
    %2 = arith.cmpi ne, %1, %c0_i32_0 : i32
    scf.if %2 {
      %cst_11 = arith.constant 0.000000e+00 : f32
      %14 = vector.broadcast %cst_11 : f32 to vector<16x16xf32>
      %c0_12 = arith.constant 0 : index
      %c0_13 = arith.constant 0 : index
      %15 = vector.load %arg2[%c0_12, %c0_13] : memref<16x16xf32, #tpu.memory_space<vmem>>, vector<16x16xf32>
      tpu.vector_store %arg2[%c0_12, %c0_13], %14 {strides = array<i32>} : memref<16x16xf32, #tpu.memory_space<vmem>>, vector<16x16xf32>,
      %cst_14 = arith.constant 0.000000e+00 : f32
      %16 = vector.broadcast %cst_14 : f32 to vector<1x16xf32>
      %c0_15 = arith.constant 0 : index
      %c0_16 = arith.constant 0 : index
      %17 = vector.load %arg3[%c0_15, %c0_16] : memref<1x16xf32, #tpu.memory_space<vmem>>, vector<1x16xf32>
      tpu.vector_store %arg3[%c0_15, %c0_16], %16 {strides = array<i32>} : memref<1x16xf32, #tpu.memory_space<vmem>>, vector<1x16xf32>,
    } else {
    }
    %c0 = arith.constant 0 : index
    %c0_1 = arith.constant 0 : index
    %3 = vector.load %arg1[%c0, %c0_1] : memref<32x16xbf16, #tpu.memory_space<vmem>>, vector<32x16xbf16>
    %c0_2 = arith.constant 0 : index
    %c0_3 = arith.constant 0 : index
    %4 = vector.load %arg2[%c0_2, %c0_3] : memref<16x16xf32, #tpu.memory_space<vmem>>, vector<16x16xf32>
    %cst = arith.constant dense<0.000000e+00> : vector<16x16xf32>
    %5 = tpu.matmul %3, %3, %cst {dimension_numbers = #tpu.dot_dimension_numbers<[0], [0], [1], [1], [0, 1, 1, 1], [], []>} : vector<32x16xbf16>, vector<32x16xbf16>, vector<16x16xf32> -> vector<16x16xf32>
    %6 = arith.addf %4, %5 : vector<16x16xf32>
    %c0_4 = arith.constant 0 : index
    %c0_5 = arith.constant 0 : index
    %7 = vector.load %arg2[%c0_4, %c0_5] : memref<16x16xf32, #tpu.memory_space<vmem>>, vector<16x16xf32>
    tpu.vector_store %arg2[%c0_4, %c0_5], %6 {strides = array<i32>} : memref<16x16xf32, #tpu.memory_space<vmem>>, vector<16x16xf32>,
    %c0_6 = arith.constant 0 : index
    %c0_7 = arith.constant 0 : index
    %8 = vector.load %arg3[%c0_6, %c0_7] : memref<1x16xf32, #tpu.memory_space<vmem>>, vector<1x16xf32>
    %9 = arith.extf %3 : vector<32x16xbf16> to vector<32x16xf32>
    %cst_8 = arith.constant dense<0.000000e+00> : vector<16xf32>
    %10 = vector.multi_reduction <add>, %9, %cst_8 [0] : vector<32x16xf32> to vector<16xf32>
    %11 = vector.shape_cast %10 : vector<16xf32> to vector<1x16xf32>
    %12 = arith.addf %8, %11 : vector<1x16xf32>
    %c0_9 = arith.constant 0 : index
    %c0_10 = arith.constant 0 : index
    %13 = vector.load %arg3[%c0_9, %c0_10] : memref<1x16xf32, #tpu.memory_space<vmem>>, vector<1x16xf32>
    tpu.vector_store %arg3[%c0_9, %c0_10], %12 {strides = array<i32>} : memref<1x16xf32, #tpu.memory_space<vmem>>, vector<1x16xf32>,
    return
  }
  func.func @transform_0(%arg0: i32) -> (i32, i32) {
    %c0_i32 = arith.constant 0 : i32
    %c0_i32_0 = arith.constant 0 : i32
    return %arg0, %c0_i32 : i32, i32
  }
  func.func @transform_1(%arg0: i32) -> (i32, i32) {
    %c0_i32 = arith.constant 0 : i32
    %c0_i32_0 = arith.constant 0 : i32
    %c0_i32_1 = arith.constant 0 : i32
    return %c0_i32, %c0_i32_0 : i32, i32
  }
  func.func @transform_2(%arg0: i32) -> (i32, i32) {
    %c0_i32 = arith.constant 0 : i32
    %c0_i32_0 = arith.constant 0 : i32
    %c0_i32_1 = arith.constant 0 : i32
    return %c0_i32, %c0_i32_0 : i32, i32
  }
}

</mosaic_0001>

<llo_original>
// kernel: tpu_custom_call.1
$region0: #{tpu_custom_call.1}
  #allocation0 [shape = 'u32[]', space=smem, size = 0x4, offset = 0x4, fixed_abs, tag = 'smem constant byte address 0x4 - core index']
  #allocation1 [shape = 'u32[144,128]{1,0:T(1,128)}', space=vmem, size = 0x12000, scoped, tag = 'internal scratch']
  %s0 = inlined_call_operand.vmem [shape: bf16[128,16], index: 0, kind: input, shape index: {}]
  %s1 = inlined_call_operand.hbm [shape: f32[16,16], index: 1, kind: output, shape index: {0}]
  %s2 = inlined_call_operand.hbm [shape: f32[1,16], index: 2, kind: output, shape index: {1}]
  %3 = xla_tuple %s1, %s2
  %s4 = sld [smem:[#allocation0]]
  $region49: #{tpu_custom_call.1} parent=0
    _
  %s6 = ssub.s32 1, %s4
  %s7 = scalar_select 0, %s6, %s4
  $region1: #{tpu_custom_call.1} parent=0
    #allocation2 [shape = 'u8[8192]{0}', space=vmem, size = 0x2000, scoped, tag = 'output window, operand 0, single buffered']
    #allocation3 [shape = 's32[2]{0}', space=sflag, size = 0x8, scoped, tag = 'scoped memory for tpu_custom_call.1']
    #allocation4 [shape = 'u8[512]{0}', space=vmem, size = 0x400, scoped, tag = 'output window, operand 1, single buffered']
    #allocation5 [shape = 's32[1]{0}', space=sflag, size = 0x4, scoped, tag = 'scoped memory for tpu_custom_call.1']
    %8 = vsyncpa [#allocation3], 0
    %9 = vsyncpa [#allocation5], 0
    loop: start=0, step=1, limit=6
    $region2: #{tpu_custom_call.1} parent=1 // loop_pre_header
      _
    $region3: #{tpu_custom_call.1} parent=1 // loop_header
      %s11 = sphi 0, %s15
      %p12 = scmp.ge.s32.totalorder %s11, 6
      %s21 = sphi 0, %s23
      %s24 = sphi 0, %s21
      %s25 = sphi 0, %s24
      %s41 = sphi 0, %s25
      %s45 = sphi 0, %s45
      %s47 = sphi 0, %s45
      %s48 = sphi 0, %s47
      %s62 = sphi 0, %s48
      %s66 = sphi 0, %s66
      %s68 = sphi 0, %s66
      %s69 = sphi 0, %s68
      %s83 = sphi 0, %s69
    $region4: #{tpu_custom_call.1} parent=1 // loop_header_branch
      %14 = sbr.rel (%p12) target = $region8
    $region5: #{tpu_custom_call.1} parent=1 // loop_body
      %s16 = ssub.s32 %s11, 1
      %s17 = ssub.s32 %s11, 2
      %s18 = sadd.s32 %s11, 1
      %s19 = ssub.s32 %s11, %s18
      %p20 = scmp.eq.s32.totalorder %s19, 0
      %s22 = sadd.s32 %s21, 1
      %s23 = scalar_select %p20, %s21, %s22
      %p26 = pneg %p20
      %p27 = scmp.eq.s32.totalorder %s11, 3
      %p28 = por %p26, %p27
      %p29 = scmp.ne.s32.totalorder %s21, %s24
      %p30 = scmp.eq.s32.totalorder %s11, 0
      %p31 = por %p29, %p30
      %p32 = scmp.ne.s32.totalorder %s21, %s24
      %p33 = scmp.eq.s32.totalorder %s16, 3
      %p34 = por %p32, %p33
      %p35 = scmp.ne.s32.totalorder %s24, %s25
      %p36 = scmp.eq.s32.totalorder %s16, 0
      %p37 = por %p35, %p36
      %p38 = scmp.ne.s32.totalorder %s24, %s25
      %p39 = scmp.eq.s32.totalorder %s17, 3
      %p40 = por %p38, %p39
      %p42 = scmp.ne.s32.totalorder %s25, %s41
      %p43 = scmp.eq.s32.totalorder %s17, 0
      %p44 = por %p42, %p43
      %s46 = sadd.s32 %s45, 1
      %p49 = scmp.eq.s32.totalorder %s11, 3
      %p50 = scmp.ne.s32.totalorder %s45, %s47
      %p51 = scmp.eq.s32.totalorder %s11, 0
      %p52 = por %p50, %p51
      %p53 = scmp.ne.s32.totalorder %s45, %s47
      %p54 = scmp.eq.s32.totalorder %s16, 3
      %p55 = por %p53, %p54
      %p56 = scmp.ne.s32.totalorder %s47, %s48
      %p57 = scmp.eq.s32.totalorder %s16, 0
      %p58 = por %p56, %p57
      %p59 = scmp.ne.s32.totalorder %s47, %s48
      %p60 = scmp.eq.s32.totalorder %s17, 3
      %p61 = por %p59, %p60
      %p63 = scmp.ne.s32.totalorder %s48, %s62
      %p64 = scmp.eq.s32.totalorder %s17, 0
      %p65 = por %p63, %p64
      %s67 = sadd.s32 %s66, 1
      %p70 = scmp.eq.s32.totalorder %s11, 3
      %p71 = scmp.ne.s32.totalorder %s66, %s68
      %p72 = scmp.eq.s32.totalorder %s11, 0
      %p73 = por %p71, %p72
      %p74 = scmp.ne.s32.totalorder %s66, %s68
      %p75 = scmp.eq.s32.totalorder %s16, 3
      %p76 = por %p74, %p75
      %p77 = scmp.ne.s32.totalorder %s68, %s69
      %p78 = scmp.eq.s32.totalorder %s16, 0
      %p79 = por %p77, %p78
      %p80 = scmp.ne.s32.totalorder %s68, %s69
      %p81 = scmp.eq.s32.totalorder %s17, 3
      %p82 = por %p80, %p81
      %p84 = scmp.ne.s32.totalorder %s69, %s83
      %p85 = scmp.eq.s32.totalorder %s17, 0
      %p86 = por %p84, %p85
      %p87 = scmp.le.s32.totalorder 1, %s11
      %p88 = scmp.lt.s32.totalorder %s11, 5
      %p89 = pnand %p87, %p88
      %p90 = pneg %p89
      // Predicated region
      $region9: #{tpu_custom_call.1} parent=5 // pred_check
        _
      $region10: #{tpu_custom_call.1} parent=5 // pred_check_branch
        %92 = sbr.rel (%p89) target = $region12
      $region11: #{tpu_custom_call.1} parent=5 // pred_region
        %s93 = ssub.s32 %s11, 1
      $region12: #{tpu_custom_call.1} parent=5 // pred_fallthru
        _
      %p94 = scmp.lt.s32.totalorder %s11, 4
      // Predicated region
      $region13: #{tpu_custom_call.1} parent=5 // pred_check
        %p95 = pneg %p94
      $region14: #{tpu_custom_call.1} parent=5 // pred_check_branch
        %97 = sbr.rel (%p95) target = $region16
      $region15: #{tpu_custom_call.1} parent=5 // pred_region
        // Predicated region
        $region17: #{tpu_custom_call.1} parent=15 // pred_check
          %p98 = pneg %p31
        $region18: #{tpu_custom_call.1} parent=15 // pred_check_branch
          %100 = sbr.rel (%p98) target = $region20
        $region19: #{tpu_custom_call.1} parent=15 // pred_region
          %s101 = smul.u32 4, %s11
          %p102 = scmp.lt.s32.totalorder %s101, 15
          %s103 = scalar_select %p102, %s101, 15
          %s104 = smul.addr %s103, 4
          %s105 = scalar_lea.vmem %s0, %s104
          %s106 = smul.u32 4, %s11
        $region20: #{tpu_custom_call.1} parent=15 // pred_fallthru
          _
      $region16: #{tpu_custom_call.1} parent=5 // pred_fallthru
        _
      %p107 = scmp.le.s32.totalorder 1, %s11
      %p108 = scmp.lt.s32.totalorder %s11, 5
      %p109 = pnand %p107, %p108
      %p110 = pneg %p109
      // Predicated region
      $region21: #{tpu_custom_call.1} parent=5 // pred_check
        _
      $region22: #{tpu_custom_call.1} parent=5 // pred_check_branch
        %112 = sbr.rel (%p109) target = $region24
      $region23: #{tpu_custom_call.1} parent=5 // pred_region
        %s113 = ssub.s32 %s11, 1
        %s114 = smul.u32 4, %s16
        %p115 = scmp.lt.s32.totalorder %s114, 15
        %s116 = scalar_select %p115, %s114, 15
        %s117 = smul.addr %s116, 4
        %s118 = scalar_lea.vmem %s0, %s117
        %p119 = pneg %p37
        %p120 = pneg %p34
        %p121 = pneg %p58
        %p122 = pneg %p55
        %p123 = pneg %p79
        %p124 = pneg %p76
        %s125 = smul.u32 4, %s16
        %p126 = scmp.lt.s32.totalorder %s125, 15
        %s127 = scalar_select %p126, %s125, 15
        %s128 = smul.addr %s127, 4
        %s129 = scalar_lea.vmem %s0, %s128
        %s130 = smul.u32 4, %s16
        %p132 = scmp.eq.s32.totalorder %s16, 0
        // Predicated region
        $region25: #{tpu_custom_call.1} parent=23 // pred_check
          %p133 = pneg %p132
        $region26: #{tpu_custom_call.1} parent=23 // pred_check_branch
          %135 = sbr.rel (%p133) target = $region28
        $region27: #{tpu_custom_call.1} parent=23 // pred_region
          %vm136 = vcmask 130048
          %137 = vst.msk [vmem:[#allocation2] sm:$0xff] %vm136, 0.0
          %138 = vst.msk [vmem:[#allocation2 + $0x8] sm:$0xff] %vm136, 0.0
          %vm139 = vcmask 122880
          %140 = vst.msk [vmem:[#allocation4] sm:$0x1] %vm139, 0.0
        $region28: #{tpu_custom_call.1} parent=23 // pred_fallthru
          _
        %v141 = vld [vmem:[%s129] sm:$0xf]
        %v142 = vld [vmem:[%s129 + $0x4] sm:$0xf]
        %v143 = vld [vmem:[%s129 + $0x8] sm:$0xf]
        %v144 = vld [vmem:[%s129 + $0xc] sm:$0xf]
        %v145 = vld [vmem:[#allocation2] sm:$0xff]
        %v146 = vld [vmem:[#allocation2 + $0x8] sm:$0xff]
        %v151 = vunpack.c.l.b16 %v141
        %v152 = vunpack.c.l.b16 %v142
        %v153 = vunpack.c.l.b16 %v143
        %v154 = vunpack.c.l.b16 %v144
        %v155 = vpack.c.b16 %v152, %v151
        %v156 = vpack.c.b16 %v154, %v153
        %159 = vxpose.xlu0.c.b16.start [1/8] %v155, 128
        %160 = vxpose.xlu0.c.b16.cont [2/8] %v156, 128
        %161 = vxpose.xlu0.c.b16.cont [3/8] 0, 128
        %162 = vxpose.xlu0.c.b16.cont [4/8] 0, 128
        %163 = vxpose.xlu0.c.b16.cont [5/8] 0, 128
        %164 = vxpose.xlu0.c.b16.cont [6/8] 0, 128
        %165 = vxpose.xlu0.c.b16.cont [7/8] 0, 128
        %166 = vxpose.xlu0.c.b16.end [8/8] 0, 128
        %v167 = vpop.trf.xlu0
        %v168 = vpop.trf.xlu0
        %v169 = vpop.trf.xlu0
        %v170 = vpop.trf.xlu0
        %v171 = vpop.trf.xlu0
        %v172 = vpop.trf.xlu0
        %v173 = vpop.trf.xlu0
        %v174 = vpop.trf.xlu0
        %vm175 = vcmask 261120
        %v177 = vsel %vm175, %v167, 0
        %179 = vmatprep.subr.bf16.mxu0 0
        %180 = vmatpush1.bf16.msra.mxu0 %v155
        %181 = vmatprep.subr.bf16.mxu0 0
        %182 = vmatpush1.bf16.msra.mxu0 %v156
        %183 = vmatprep.subr.bf16.mxu0 0
        %184 = vmatpush1.bf16.msra.mxu0 0
        %185 = vmatprep.subr.bf16.mxu0 0
        %186 = vmatpush1.bf16.msra.mxu0 0
        %187 = vmatprep.subr.bf16.mxu0 0
        %188 = vmatpush1.bf16.msra.mxu0 0
        %189 = vmatprep.subr.bf16.mxu0 0
        %190 = vmatpush1.bf16.msra.mxu0 0
        %191 = vmatprep.subr.bf16.mxu0 0
        %192 = vmatpush1.bf16.msra.mxu0 0
        %193 = vmatprep.subr.bf16.mxu0 0
        %194 = vmatpush1.bf16.msra.mxu0 0
        %195 = vmatprep.subr.bf16.mxu0 0
        %196 = vmatpush1.bf16.msra.mxu0 0
        %197 = vmatprep.subr.bf16.mxu0 0
        %198 = vmatpush1.bf16.msra.mxu0 0
        %199 = vmatprep.subr.bf16.mxu0 0
        %200 = vmatpush1.bf16.msra.mxu0 0
        %201 = vmatprep.subr.bf16.mxu0 0
        %202 = vmatpush1.bf16.msra.mxu0 0
        %203 = vmatprep.subr.bf16.mxu0 0
        %204 = vmatpush1.bf16.msra.mxu0 0
        %205 = vmatprep.subr.bf16.mxu0 0
        %206 = vmatpush1.bf16.msra.mxu0 0
        %207 = vmatprep.subr.bf16.mxu0 0
        %208 = vmatpush1.bf16.msra.mxu0 0
        %209 = vmatprep.subr.bf16.mxu0 0
        %210 = vmatpush1.bf16.msra.mxu0 0
        %211 = vmatprep.mubr.bf16.mxu0 0
        %212 = vmatmul.mubr.bf16.gmra.mrb[0].mxu0 %v177
        %v213 = vpop.f32.mrb[0].mxu0
        %v214 = vadd.f32 0.0, %v213
        %v215 = vpop.f32.mrb[0].mxu0
        %v216 = vpop.f32.mrb[0].mxu0
        %v217 = vadd.f32 0.0, %v216
        %v218 = vpop.f32.mrb[0].mxu0
        %219 = vdwg.mxu0
        %v220 = vadd.f32 %v145, %v214
        %v221 = vadd.f32 %v146, %v217
        %vm222 = vcmask 130048
        %223 = vst.msk [vmem:[#allocation2] sm:$0xff] %vm222, %v220
        %224 = vst.msk [vmem:[#allocation2 + $0x8] sm:$0xff] %vm222, %v221
        %v225 = vld [vmem:[#allocation4] sm:$0x1]
        %v226 = vunpack.c.l.bf16 %v141
        %v227 = vunpack.c.l.bf16 %v142
        %v228 = vunpack.c.l.bf16 %v143
        %v229 = vunpack.c.l.bf16 %v144
        %v230 = vsel %vm222, %v226, 0.0
        %v231 = vsel %vm222, %v227, 0.0
        %v232 = vadd.f32 %v230, %v231
        %v233 = vsel %vm222, %v228, 0.0
        %v234 = vadd.f32 %v232, %v233
        %v235 = vsel %vm222, %v229, 0.0
        %v236 = vadd.f32 %v234, %v235
        %v237 = vrot.slane %v236, 4
        %v238 = vadd.f32 %v236, %v237
        %v239 = vrot.slane %v238, 2
        %v240 = vadd.f32 %v238, %v239
        %v241 = vrot.slane %v240, 1
        %v242 = vadd.f32 %v240, %v241
        %v243 = vadd.f32 %v225, %v242
        %vm244 = vcmask 122880
        %245 = vst.msk [vmem:[#allocation4] sm:$0x1] %vm244, %v243
        // Predicated region
        $region29: #{tpu_custom_call.1} parent=23 // pred_check
          %p246 = pneg %p55
        $region30: #{tpu_custom_call.1} parent=23 // pred_check_branch
          %248 = sbr.rel (%p246) target = $region32
        $region31: #{tpu_custom_call.1} parent=23 // pred_region
          %s250 = ssub.s32 256, 256
          %251 = vsyncadd [#allocation3], %s250
          %s252 = sshll.u32 [#allocation2], 4
          %s253 = int_to_ptr.vmem [resolvable:$true] %s252
          %258 = dma.vmem_to_hbm [thread:$0]  %s253, 256, %s1, [#allocation3], 128, 128, 8
        $region32: #{tpu_custom_call.1} parent=23 // pred_fallthru
          _
        // Predicated region
        $region33: #{tpu_custom_call.1} parent=23 // pred_check
          %p259 = pneg %p76
        $region34: #{tpu_custom_call.1} parent=23 // pred_check_branch
          %261 = sbr.rel (%p259) target = $region36
        $region35: #{tpu_custom_call.1} parent=23 // pred_region
          %s263 = ssub.s32 16, 16
          %264 = vsyncadd [#allocation5], %s263
          %s266 = sshll.u32 [#allocation4], 4
          %s267 = int_to_ptr.vmem [resolvable:$true] %s266
          %269 = dma.vmem_to_hbm [thread:$0]  %s267, 16, %s2, [#allocation5]
        $region36: #{tpu_custom_call.1} parent=23 // pred_fallthru
          _
        // Predicated region
        $region37: #{tpu_custom_call.1} parent=23 // pred_check
          %p270 = pneg %p55
        $region38: #{tpu_custom_call.1} parent=23 // pred_check_branch
          %272 = sbr.rel (%p270) target = $region40
        $region39: #{tpu_custom_call.1} parent=23 // pred_region
          %273 = dma.done [#allocation3], 256
        $region40: #{tpu_custom_call.1} parent=23 // pred_fallthru
          _
        // Predicated region
        $region41: #{tpu_custom_call.1} parent=23 // pred_check
          %p274 = pneg %p76
        $region42: #{tpu_custom_call.1} parent=23 // pred_check_branch
          %276 = sbr.rel (%p274) target = $region44
        $region43: #{tpu_custom_call.1} parent=23 // pred_region
          %277 = dma.done [#allocation5], 16
        $region44: #{tpu_custom_call.1} parent=23 // pred_fallthru
          _
      $region24: #{tpu_custom_call.1} parent=5 // pred_fallthru
        _
      %p278 = scmp.le.s32.totalorder 2, %s11
      // Predicated region
      $region45: #{tpu_custom_call.1} parent=5 // pred_check
        %p279 = pneg %p278
      $region46: #{tpu_custom_call.1} parent=5 // pred_check_branch
        %281 = sbr.rel (%p279) target = $region48
      $region47: #{tpu_custom_call.1} parent=5 // pred_region
        %s282 = ssub.s32 %s11, 2
      $region48: #{tpu_custom_call.1} parent=5 // pred_fallthru
        _
    $region6: #{tpu_custom_call.1} parent=1 // loop_footer
      %s15 = sadd.s32 1, %s11
    $region7: #{tpu_custom_call.1} parent=1 // loop_footer_branch
      %10 = sbr.rel target = $region3
    $region8: #{tpu_custom_call.1} parent=1 // loop_exit
      _
    %283 = vsyncpa [#allocation3], 1
    %s284 = scalar_lea.sflag [#allocation3], 1
    %285 = vsyncpa %s284, 1
    %286 = vsyncpa [#allocation5], 1

</llo_original>
